<compile_context>
chip_gen: v6e
topology: v6e:2x2x1
jax: 0.10.0
libtpu: 0.0.40
codegen_flags: <defaults>
</compile_context>

<pallas_src>
import functools

import jax
import jax.numpy as jnp
from jax.experimental import pallas as pl
from jax.experimental.pallas import tpu as pltpu


# -----------------------------------------------------------------------------
# In-kernel helpers (traced inside the fused kernel body).
# -----------------------------------------------------------------------------
def _lsce_block(x, t, epsilon):
    """Label-smoothing CE over a (B, C) f32 block; t is (B, 1) int32."""
    B, C = x.shape
    m = jnp.max(x, axis=-1, keepdims=True)                       # (B, 1)
    z = x - m                                                     # (B, C)
    lse = jnp.log(jnp.sum(jnp.exp(z), axis=-1, keepdims=True))    # (B, 1)

    # z_t (the shifted logit at the target class) via one iota compare +
    # lane reduce; no log_probs / smoothed one-hot temporaries are built.
    class_ids = jax.lax.broadcasted_iota(jnp.int32, (B, C), 1)
    z_t = jnp.sum(jnp.where(class_ids == t, z, 0.0),
                  axis=-1, keepdims=True)                         # (B, 1)
    z_sum = jnp.sum(z, axis=-1, keepdims=True)                    # (B, 1)

    per_sample = -((1.0 - epsilon) * (z_t - lse)
                   + (epsilon / C) * (z_sum - C * lse))           # (B, 1)
    return jnp.sum(per_sample) * (1.0 / B)


def _mmd_rbf_block(s, t, kernel_mul, kernel_num):
    """Multi-bandwidth RBF MMD between s (B, D) and t (B, D), both f32."""
    B, D = s.shape
    n = 2 * B
    total = jnp.concatenate([s, t], axis=0)                       # (n, D)
    # TODO(synk): for v6e/v7x with large D, cast `total` to bf16 for the Gram
    # matmul (keep preferred_element_type=f32) once tolerance is re-validated.
    tt = total * total                                            # (n, D)

    # Squared norms: column via a lane reduce, row via a tiny MXU matvec with
    # a ones vector (avoids an XLU transpose of the (n, 1) column).
    sq_col = jnp.sum(tt, axis=-1, keepdims=True)                  # (n, 1)
    ones_row = jnp.ones((1, D), jnp.float32)
    sq_row = jax.lax.dot_general(
        ones_row, tt, dimension_numbers=(((1,), (1,)), ((), ())),
        preferred_element_type=jnp.float32)                       # (1, n)

    gram = jax.lax.dot_general(
        total, total, dimension_numbers=(((1,), (1,)), ((), ())),
        preferred_element_type=jnp.float32)                       # (n, n)

    # Clamp: cancellation in the Gram form can make distances slightly < 0.
    l2 = jnp.maximum(sq_col + sq_row - 2.0 * gram, 0.0)           # (n, n)

    # Bandwidth (matches the reference: sum over all entries / (n^2 - n)).
    bandwidth = jnp.sum(l2) * (1.0 / float(n * n - n))
    bandwidth = bandwidth / (kernel_mul ** (kernel_num // 2))

    if kernel_mul == 2.0:
        # exp-squaring: 1 EUP exp + (kernel_num-1) VPU squarings instead of
        # kernel_num full-tile exps (EUP is the binding unit here).
        c_small = -1.0 / (bandwidth * (2.0 ** (kernel_num - 1)))  # scalar
        v = jnp.exp(l2 * c_small)
        kern = v
        cur = v
        for _ in range(kernel_num - 1):
            cur = cur * cur
            kern = kern + cur
    else:
        kern = jnp.zeros_like(l2)
        for i in range(kernel_num):
            c_i = -1.0 / (bandwidth * (kernel_mul ** i))          # scalar
            kern = kern + jnp.exp(l2 * c_i)

    # Signed quadrant sum: XX + YY - XY - YX == (s^T K s) / B^2 with
    # s = [+1]*B ++ [-1]*B. Done as one MXU matvec + a small VPU multiply,
    # instead of a full (n, n) sign-mask multiply + XLU reduce.
    rid = jax.lax.broadcasted_iota(jnp.int32, (n, 1), 0)
    s_col = jnp.where(rid < B, 1.0, -1.0)                         # (n, 1)
    ks = jax.lax.dot_general(
        kern, s_col, dimension_numbers=(((1,), (0,)), ((), ())),
        preferred_element_type=jnp.float32)                       # (n, 1)
    return jnp.sum(s_col * ks) * (1.0 / float(B * B))


# -----------------------------------------------------------------------------
# Fused kernel: both LSCE terms + MMD -> one weighted scalar.
# -----------------------------------------------------------------------------
def _fused_loss_kernel(x0_ref, t0_ref, x1_ref, t1_ref, fa_ref, fb_ref, out_ref,
                       *, epsilon, kernel_mul, kernel_num, w0, w1):
    lsce_g = _lsce_block(x0_ref[...].astype(jnp.float32), t0_ref[...], epsilon)
    lsce_p = _lsce_block(x1_ref[...].astype(jnp.float32), t1_ref[...], epsilon)
    mmd = _mmd_rbf_block(fa_ref[...].astype(jnp.float32),
                         fb_ref[...].astype(jnp.float32),
                         kernel_mul, kernel_num)
    out_ref[0, 0] = w0 * (lsce_g + lsce_p) + w1 * mmd


# -----------------------------------------------------------------------------
# LSCE_MBMMD_GROUP forward
#   x_tuple = (global_logits (N, Cg),
#              person_logits (N, M, Cp),
#              feat_a        (N, M, D),     # x_tuple[-2]
#              feat_b        (N, M, D))     # x_tuple[-1]
# -----------------------------------------------------------------------------
def lsce_mbmmd_group_forward(x_tuple, target, target_person,
                             weights=(1.0, 0.1), epsilon=0.1,
                             kernel_mul=2.0, kernel_num=5):
    x0, x1 = x_tuple[0], x_tuple[1]
    feat_a, feat_b = x_tuple[-2], x_tuple[-1]
    N, M, Cp = x1.shape
    D = feat_b.shape[-1]
    Ng = x0.shape[0]

    x1f = x1.reshape(N * M, Cp)
    fa = feat_a.reshape(N * M, D)
    fb = feat_b.reshape(N * M, D)
    # TODO(synk): targets as (B, 1) i32 VMEM tiles are lane-padded; switch to
    # scalar prefetch / SMEM once a batch-tiled grid is added for large B.
    t0 = target.astype(jnp.int32).reshape(Ng, 1)
    t1 = target_person.astype(jnp.int32).reshape(N * M, 1)

    kernel = functools.partial(
        _fused_loss_kernel,
        epsilon=float(epsilon), kernel_mul=float(kernel_mul),
        kernel_num=int(kernel_num),
        w0=float(weights[0]), w1=float(weights[1]))

    # TODO(synk): for large class counts (ReID: 1k-11k) or large n=2*N*M, add a
    # batch-tiled grid for the LSCE terms and row-block tiling for the MMD Gram
    # matrix so the working set stays under v7x's 64 MiB VMEM.
    out = pl.pallas_call(
        kernel,
        out_shape=jax.ShapeDtypeStruct((1, 1), jnp.float32),
        in_specs=[pl.BlockSpec(memory_space=pltpu.MemorySpace.VMEM)] * 6,
        out_specs=pl.BlockSpec(memory_space=pltpu.MemorySpace.SMEM),
    )(x0.astype(jnp.float32), t0, x1f.astype(jnp.float32), t1,
      fa.astype(jnp.float32), fb.astype(jnp.float32))
    return out[0, 0]


# -----------------------------------------------------------------------------
# Pure-JAX reference (mirrors the PyTorch semantics) for verification.
# -----------------------------------------------------------------------------
def _lsce_ref(logits, targets, epsilon=0.1):
    logits = logits.astype(jnp.float32)
    C = logits.shape[-1]
    log_probs = jax.nn.log_softmax(logits, axis=-1)
    onehot = jax.nn.one_hot(targets, C, dtype=jnp.float32)
    smooth = (1.0 - epsilon) * onehot + epsilon / C
    return jnp.sum(jnp.mean(-smooth * log_probs, axis=0))


def _mmd_ref(source, target, kernel_mul=2.0, kernel_num=5):
    source = source.astype(jnp.float32)
    target = target.astype(jnp.float32)
    B = source.shape[0]
    total = jnp.concatenate([source, target], axis=0)
    n = total.shape[0]
    d2 = jnp.sum((total[None, :, :] - total[:, None, :]) ** 2, axis=2)
    bandwidth = jnp.sum(d2) / (n * n - n)
    bandwidth = bandwidth / (kernel_mul ** (kernel_num // 2))
    kern = sum(jnp.exp(-d2 / (bandwidth * kernel_mul ** i))
               for i in range(kernel_num))
    xx = jnp.mean(kern[:B, :B])
    yy = jnp.mean(kern[B:, B:])
    xy = jnp.mean(kern[:B, B:])
    yx = jnp.mean(kern[B:, :B])
    return xx + yy - xy - yx


def _forward_ref(x_tuple, target, target_person, weights=(1.0, 0.1), epsilon=0.1):
    x0, x1 = x_tuple[0], x_tuple[1]
    feat_a, feat_b = x_tuple[-2], x_tuple[-1]
    N, M, Cp = x1.shape
    D = feat_b.shape[-1]
    l = _lsce_ref(x0, target, epsilon) + _lsce_ref(
        x1.reshape(N * M, Cp), target_person.reshape(N * M), epsilon)
    m = _mmd_ref(feat_a.reshape(N * M, D), feat_b.reshape(N * M, D))
    return weights[0] * l + weights[1] * m


if __name__ == "__main__":
    key = jax.random.PRNGKey(0)
    N, M = 2, 4            # groups, members per group
    Cg, Cp = 16, 16        # global / per-person class counts
    D = 32                 # feature dim for MMD branches

    k0, k1, k2, k3, k4, k5 = jax.random.split(key, 6)
    x0 = jax.random.normal(k0, (N, Cg), dtype=jnp.float32)          # global logits
    x1 = jax.random.normal(k1, (N, M, Cp), dtype=jnp.float32)       # person logits
    feat_a = jax.random.normal(k2, (N, M, D), dtype=jnp.float32)    # x_tuple[-2]
    feat_b = jax.random.normal(k3, (N, M, D), dtype=jnp.float32)    # x_tuple[-1]
    target = jax.random.randint(k4, (N,), 0, Cg, dtype=jnp.int32)
    target_person = jax.random.randint(k5, (N, M), 0, Cp, dtype=jnp.int32)

    x_tuple = (x0, x1, feat_a, feat_b)

    loss = lsce_mbmmd_group_forward(x_tuple, target, target_person)
    loss = jax.block_until_ready(loss)

    ref = jax.block_until_ready(_forward_ref(x_tuple, target, target_person))
    assert jnp.allclose(loss, ref, rtol=1e-4, atol=1e-4), (loss, ref)

    print("KERNEL_OK")
</pallas_src>

<mosaic_0001>
module attributes {stable_mosaic.version = 11 : i64} {
  func.func @_fused_loss_kernel(%arg0: memref<2x16xf32, #tpu.memory_space<vmem>>, %arg1: memref<2x1xi32, #tpu.memory_space<vmem>>, %arg2: memref<8x16xf32, #tpu.memory_space<vmem>>, %arg3: memref<8x1xi32, #tpu.memory_space<vmem>>, %arg4: memref<8x32xf32, #tpu.memory_space<vmem>>, %arg5: memref<8x32xf32, #tpu.memory_space<vmem>>, %arg6: memref<1x1xf32, #tpu.memory_space<smem>>) attributes {dimension_semantics = [], scalar_prefetch = 0 : i64, scratch_operands = 0 : i64, tpu.core_type = #tpu.core_type<tc>} {
    %c0 = arith.constant 0 : index
    %c0_0 = arith.constant 0 : index
    %0 = vector.load %arg0[%c0, %c0_0] : memref<2x16xf32, #tpu.memory_space<vmem>>, vector<2x16xf32>
    %c0_1 = arith.constant 0 : index
    %c0_2 = arith.constant 0 : index
    %1 = vector.load %arg1[%c0_1, %c0_2] : memref<2x1xi32, #tpu.memory_space<vmem>>, vector<2x1xi32>
    %cst = arith.constant dense<0xFF800000> : vector<2xf32>
    %2 = vector.multi_reduction <maximumf>, %0, %cst [1] : vector<2x16xf32> to vector<2xf32>
    %3 = vector.shape_cast %2 : vector<2xf32> to vector<2x1xf32>
    %4 = vector.broadcast %3 : vector<2x1xf32> to vector<2x16xf32>
    %5 = arith.subf %0, %4 : vector<2x16xf32>
    %6 = math.exp %5 : vector<2x16xf32>
    %cst_3 = arith.constant dense<0.000000e+00> : vector<2xf32>
    %7 = vector.multi_reduction <add>, %6, %cst_3 [1] : vector<2x16xf32> to vector<2xf32>
    %8 = vector.shape_cast %7 : vector<2xf32> to vector<2x1xf32>
    %9 = math.log %8 : vector<2x1xf32>
    %10 = tpu.iota {dimensions = array<i32: 1>} : vector<2x16xi32>
    %11 = vector.broadcast %1 : vector<2x1xi32> to vector<2x16xi32>
    %12 = arith.cmpi eq, %10, %11 : vector<2x16xi32>
    %cst_4 = arith.constant 0.000000e+00 : f32
    %13 = vector.broadcast %cst_4 : f32 to vector<2x16xf32>
    %14 = arith.select %12, %5, %13 : vector<2x16xi1>, vector<2x16xf32>
    %cst_5 = arith.constant dense<0.000000e+00> : vector<2xf32>
    %15 = vector.multi_reduction <add>, %14, %cst_5 [1] : vector<2x16xf32> to vector<2xf32>
    %16 = vector.shape_cast %15 : vector<2xf32> to vector<2x1xf32>
    %cst_6 = arith.constant dense<0.000000e+00> : vector<2xf32>
    %17 = vector.multi_reduction <add>, %5, %cst_6 [1] : vector<2x16xf32> to vector<2xf32>
    %18 = vector.shape_cast %17 : vector<2xf32> to vector<2x1xf32>
    %19 = arith.subf %16, %9 : vector<2x1xf32>
    %cst_7 = arith.constant 0.899999976 : f32
    %20 = vector.broadcast %cst_7 : f32 to vector<2x1xf32>
    %21 = arith.mulf %20, %19 : vector<2x1xf32>
    %cst_8 = arith.constant 1.600000e+01 : f32
    %22 = vector.broadcast %cst_8 : f32 to vector<2x1xf32>
    %23 = arith.mulf %22, %9 : vector<2x1xf32>
    %24 = arith.subf %18, %23 : vector<2x1xf32>
    %cst_9 = arith.constant 6.250000e-03 : f32
    %25 = vector.broadcast %cst_9 : f32 to vector<2x1xf32>
    %26 = arith.mulf %25, %24 : vector<2x1xf32>
    %27 = arith.addf %21, %26 : vector<2x1xf32>
    %cst_10 = arith.constant 0.000000e+00 : f32
    %28 = vector.broadcast %cst_10 : f32 to vector<2x1xf32>
    %29 = arith.subf %28, %27 : vector<2x1xf32>
    %30 = vector.shape_cast %29 : vector<2x1xf32> to vector<1x2x1xf32>
    %cst_11 = arith.constant dense<0.000000e+00> : vector<1xf32>
    %31 = vector.multi_reduction <add>, %30, %cst_11 [1, 2] : vector<1x2x1xf32> to vector<1xf32>
    %32 = vector.shape_cast %31 : vector<1xf32> to vector<1x1x1xf32>
    %33 = vector.extract %32[0, 0, 0] : f32 from vector<1x1x1xf32>
    %cst_12 = arith.constant 5.000000e-01 : f32
    %34 = arith.mulf %33, %cst_12 : f32
    %c0_13 = arith.constant 0 : index
    %c0_14 = arith.constant 0 : index
    %35 = vector.load %arg2[%c0_13, %c0_14] : memref<8x16xf32, #tpu.memory_space<vmem>>, vector<8x16xf32>
    %c0_15 = arith.constant 0 : index
    %c0_16 = arith.constant 0 : index
    %36 = vector.load %arg3[%c0_15, %c0_16] : memref<8x1xi32, #tpu.memory_space<vmem>>, vector<8x1xi32>
    %cst_17 = arith.constant dense<0xFF800000> : vector<8xf32>
    %37 = vector.multi_reduction <maximumf>, %35, %cst_17 [1] : vector<8x16xf32> to vector<8xf32>
    %38 = vector.shape_cast %37 : vector<8xf32> to vector<8x1xf32>
    %39 = vector.broadcast %38 : vector<8x1xf32> to vector<8x16xf32>
    %40 = arith.subf %35, %39 : vector<8x16xf32>
    %41 = math.exp %40 : vector<8x16xf32>
    %cst_18 = arith.constant dense<0.000000e+00> : vector<8xf32>
    %42 = vector.multi_reduction <add>, %41, %cst_18 [1] : vector<8x16xf32> to vector<8xf32>
    %43 = vector.shape_cast %42 : vector<8xf32> to vector<8x1xf32>
    %44 = math.log %43 : vector<8x1xf32>
    %45 = tpu.iota {dimensions = array<i32: 1>} : vector<8x16xi32>
    %46 = vector.broadcast %36 : vector<8x1xi32> to vector<8x16xi32>
    %47 = arith.cmpi eq, %45, %46 : vector<8x16xi32>
    %cst_19 = arith.constant 0.000000e+00 : f32
    %48 = vector.broadcast %cst_19 : f32 to vector<8x16xf32>
    %49 = arith.select %47, %40, %48 : vector<8x16xi1>, vector<8x16xf32>
    %cst_20 = arith.constant dense<0.000000e+00> : vector<8xf32>
    %50 = vector.multi_reduction <add>, %49, %cst_20 [1] : vector<8x16xf32> to vector<8xf32>
    %51 = vector.shape_cast %50 : vector<8xf32> to vector<8x1xf32>
    %cst_21 = arith.constant dense<0.000000e+00> : vector<8xf32>
    %52 = vector.multi_reduction <add>, %40, %cst_21 [1] : vector<8x16xf32> to vector<8xf32>
    %53 = vector.shape_cast %52 : vector<8xf32> to vector<8x1xf32>
    %54 = arith.subf %51, %44 : vector<8x1xf32>
    %cst_22 = arith.constant 0.899999976 : f32
    %55 = vector.broadcast %cst_22 : f32 to vector<8x1xf32>
    %56 = arith.mulf %55, %54 : vector<8x1xf32>
    %cst_23 = arith.constant 1.600000e+01 : f32
    %57 = vector.broadcast %cst_23 : f32 to vector<8x1xf32>
    %58 = arith.mulf %57, %44 : vector<8x1xf32>
    %59 = arith.subf %53, %58 : vector<8x1xf32>
    %cst_24 = arith.constant 6.250000e-03 : f32
    %60 = vector.broadcast %cst_24 : f32 to vector<8x1xf32>
    %61 = arith.mulf %60, %59 : vector<8x1xf32>
    %62 = arith.addf %56, %61 : vector<8x1xf32>
    %cst_25 = arith.constant 0.000000e+00 : f32
    %63 = vector.broadcast %cst_25 : f32 to vector<8x1xf32>
    %64 = arith.subf %63, %62 : vector<8x1xf32>
    %65 = vector.shape_cast %64 : vector<8x1xf32> to vector<1x8x1xf32>
    %cst_26 = arith.constant dense<0.000000e+00> : vector<1xf32>
    %66 = vector.multi_reduction <add>, %65, %cst_26 [1, 2] : vector<1x8x1xf32> to vector<1xf32>
    %67 = vector.shape_cast %66 : vector<1xf32> to vector<1x1x1xf32>
    %68 = vector.extract %67[0, 0, 0] : f32 from vector<1x1x1xf32>
    %cst_27 = arith.constant 1.250000e-01 : f32
    %69 = arith.mulf %68, %cst_27 : f32
    %c0_28 = arith.constant 0 : index
    %c0_29 = arith.constant 0 : index
    %70 = vector.load %arg4[%c0_28, %c0_29] : memref<8x32xf32, #tpu.memory_space<vmem>>, vector<8x32xf32>
    %c0_30 = arith.constant 0 : index
    %c0_31 = arith.constant 0 : index
    %71 = vector.load %arg5[%c0_30, %c0_31] : memref<8x32xf32, #tpu.memory_space<vmem>>, vector<8x32xf32>
    %72 = tpu.concatenate %70, %71 in 0 : vector<8x32xf32>, vector<8x32xf32> -> vector<16x32xf32>
    %73 = arith.mulf %72, %72 : vector<16x32xf32>
    %cst_32 = arith.constant dense<0.000000e+00> : vector<16xf32>
    %74 = vector.multi_reduction <add>, %73, %cst_32 [1] : vector<16x32xf32> to vector<16xf32>
    %75 = vector.shape_cast %74 : vector<16xf32> to vector<16x1xf32>
    %cst_33 = arith.constant 1.000000e+00 : f32
    %76 = vector.broadcast %cst_33 : f32 to vector<1x32xf32>
    %cst_34 = arith.constant dense<0.000000e+00> : vector<1x16xf32>
    %77 = tpu.matmul %76, %73, %cst_34 {dimension_numbers = #tpu.dot_dimension_numbers<[1], [1], [0], [0], [0, 0, 1, 0], [], []>} : vector<1x32xf32>, vector<16x32xf32>, vector<1x16xf32> -> vector<1x16xf32>
    %cst_35 = arith.constant dense<0.000000e+00> : vector<16x16xf32>
    %78 = tpu.matmul %72, %72, %cst_35 {dimension_numbers = #tpu.dot_dimension_numbers<[1], [1], [0], [0], [0, 0, 1, 0], [], []>} : vector<16x32xf32>, vector<16x32xf32>, vector<16x16xf32> -> vector<16x16xf32>
    %79 = vector.broadcast %75 : vector<16x1xf32> to vector<16x16xf32>
    %80 = vector.broadcast %77 : vector<1x16xf32> to vector<16x16xf32>
    %81 = arith.addf %79, %80 : vector<16x16xf32>
    %cst_36 = arith.constant 2.000000e+00 : f32
    %82 = vector.broadcast %cst_36 : f32 to vector<16x16xf32>
    %83 = arith.mulf %82, %78 : vector<16x16xf32>
    %84 = arith.subf %81, %83 : vector<16x16xf32>
    %cst_37 = arith.constant 0.000000e+00 : f32
    %85 = vector.broadcast %cst_37 : f32 to vector<16x16xf32>
    %86 = arith.maximumf %84, %85 : vector<16x16xf32>
    %87 = vector.shape_cast %86 : vector<16x16xf32> to vector<1x16x16xf32>
    %cst_38 = arith.constant dense<0.000000e+00> : vector<1xf32>
    %88 = vector.multi_reduction <add>, %87, %cst_38 [1, 2] : vector<1x16x16xf32> to vector<1xf32>
    %89 = vector.shape_cast %88 : vector<1xf32> to vector<1x1x1xf32>
    %90 = vector.extract %89[0, 0, 0] : f32 from vector<1x1x1xf32>
    %cst_39 = arith.constant 0.00416666688 : f32
    %91 = arith.mulf %90, %cst_39 : f32
    %cst_40 = arith.constant 4.000000e+00 : f32
    %92 = arith.divf %91, %cst_40 : f32
    %cst_41 = arith.constant 1.600000e+01 : f32
    %93 = arith.mulf %92, %cst_41 : f32
    %cst_42 = arith.constant -1.000000e+00 : f32
    %94 = arith.divf %cst_42, %93 : f32
    %95 = vector.broadcast %94 : f32 to vector<16x16xf32>
    %96 = arith.mulf %86, %95 : vector<16x16xf32>
    %97 = math.exp %96 : vector<16x16xf32>
    %98 = arith.mulf %97, %97 : vector<16x16xf32>
    %99 = arith.addf %97, %98 : vector<16x16xf32>
    %100 = arith.mulf %98, %98 : vector<16x16xf32>
    %101 = arith.addf %99, %100 : vector<16x16xf32>
    %102 = arith.mulf %100, %100 : vector<16x16xf32>
    %103 = arith.addf %101, %102 : vector<16x16xf32>
    %104 = arith.mulf %102, %102 : vector<16x16xf32>
    %105 = arith.addf %103, %104 : vector<16x16xf32>
    %106 = tpu.iota {dimensions = array<i32: 0>} : vector<16x1xi32>
    %c8_i32 = arith.constant 8 : i32
    %107 = vector.broadcast %c8_i32 : i32 to vector<16x1xi32>
    %108 = arith.cmpi slt, %106, %107 : vector<16x1xi32>
    %cst_43 = arith.constant 1.000000e+00 : f32
    %cst_44 = arith.constant -1.000000e+00 : f32
    %109 = vector.broadcast %cst_43 : f32 to vector<16x1xf32>
    %110 = vector.broadcast %cst_44 : f32 to vector<16x1xf32>
    %111 = arith.select %108, %109, %110 : vector<16x1xi1>, vector<16x1xf32>
    %cst_45 = arith.constant dense<0.000000e+00> : vector<16x1xf32>
    %112 = tpu.matmul %105, %111, %cst_45 {dimension_numbers = #tpu.dot_dimension_numbers<[1], [0], [0], [1], [0, 0, 1, 1], [], []>} : vector<16x16xf32>, vector<16x1xf32>, vector<16x1xf32> -> vector<16x1xf32>
    %113 = arith.mulf %111, %112 : vector<16x1xf32>
    %114 = vector.shape_cast %113 : vector<16x1xf32> to vector<1x16x1xf32>
    %cst_46 = arith.constant dense<0.000000e+00> : vector<1xf32>
    %115 = vector.multi_reduction <add>, %114, %cst_46 [1, 2] : vector<1x16x1xf32> to vector<1xf32>
    %116 = vector.shape_cast %115 : vector<1xf32> to vector<1x1x1xf32>
    %117 = vector.extract %116[0, 0, 0] : f32 from vector<1x1x1xf32>
    %cst_47 = arith.constant 1.562500e-02 : f32
    %118 = arith.mulf %117, %cst_47 : f32
    %119 = arith.addf %34, %69 : f32
    %cst_48 = arith.constant 1.000000e+00 : f32
    %120 = arith.mulf %cst_48, %119 : f32
    %cst_49 = arith.constant 1.000000e-01 : f32
    %121 = arith.mulf %cst_49, %118 : f32
    %122 = arith.addf %120, %121 : f32
    %c0_50 = arith.constant 0 : index
    %c0_51 = arith.constant 0 : index
    %123 = memref.load %arg6[%c0_50, %c0_51] : memref<1x1xf32, #tpu.memory_space<smem>>
    memref.store %122, %arg6[%c0_50, %c0_51] : memref<1x1xf32, #tpu.memory_space<smem>>
    return
  }
}

</mosaic_0001>

<llo_original>
// kernel: tpu_custom_call.1
$region0: #{tpu_custom_call.1}
  #allocation0 [shape = 'u32[]', space=smem, size = 0x4, offset = 0x4, fixed_abs, tag = 'smem constant byte address 0x4 - core index']
  #allocation1 [shape = 'u32[144,128]{1,0:T(1,128)}', space=vmem, size = 0x12000, scoped, tag = 'internal scratch']
  %s0 = inlined_call_operand.hbm [shape: f32[2,16], index: 0, kind: input, shape index: {}]
  %s1 = inlined_call_operand.vmem [shape: s32[2,1], index: 1, kind: input, shape index: {}]
  %s2 = inlined_call_operand.vmem [shape: f32[8,16], index: 2, kind: input, shape index: {}]
  %s3 = inlined_call_operand.vmem [shape: s32[8,1], index: 3, kind: input, shape index: {}]
  %s4 = inlined_call_operand.vmem [shape: f32[8,32], index: 4, kind: input, shape index: {}]
  %s5 = inlined_call_operand.hbm [shape: f32[8,32], index: 5, kind: input, shape index: {}]
  %s6 = inlined_call_operand.hbm [shape: f32[1,1], index: 6, kind: output, shape index: {}]
  %s7 = sld [smem:[#allocation0]]
  $region42: #{tpu_custom_call.1} parent=0
    _
  %s9 = ssub.s32 1, %s7
  %s10 = scalar_select 0, %s9, %s7
  $region1: #{tpu_custom_call.1} parent=0
    #allocation2 [shape = 'u8[1024]{0}', space=vmem, size = 0x400, scoped, tag = 'input window, operand 0, single buffered']
    #allocation3 [shape = 's32[1]{0}', space=sflag, size = 0x4, scoped, tag = 'scoped memory for tpu_custom_call.1']
    #allocation4 [shape = 's32[1]{0}', space=sflag, size = 0x4, scoped, tag = 'scoped memory for tpu_custom_call.1']
    #allocation5 [shape = 'u8[4096]{0}', space=vmem, size = 0x1000, scoped, tag = 'input window, operand 5, single buffered']
    #allocation6 [shape = 's32[1]{0}', space=sflag, size = 0x4, scoped, tag = 'scoped memory for tpu_custom_call.1']
    #allocation7 [shape = 'u8[512]{0}', space=smem, size = 0x200, scoped, tag = 'output window, operand 0, single buffered']
    %11 = vsyncpa [#allocation3], 0
    %12 = vsyncpa [#allocation6], 0
    %13 = vsyncpa [#allocation4], 0
    // Predicated region
    $region2: #{tpu_custom_call.1} parent=1 // pred_check
      _
    $region3: #{tpu_custom_call.1} parent=1 // pred_check_branch
      %15 = sbr.rel (0) target = $region5
    $region4: #{tpu_custom_call.1} parent=1 // pred_region
      %s17 = ssub.s32 32, 32
      %18 = vsyncadd [#allocation3], %s17
      %s20 = sshll.u32 [#allocation2], 4
      %s21 = int_to_ptr.vmem [resolvable:$true] %s20
      %23 = dma.hbm_to_vmem [thread:$0]  %s0, 32, %s21, [#allocation3]
    $region5: #{tpu_custom_call.1} parent=1 // pred_fallthru
      _
    // Predicated region
    $region6: #{tpu_custom_call.1} parent=1 // pred_check
      _
    $region7: #{tpu_custom_call.1} parent=1 // pred_check_branch
      %25 = sbr.rel (0) target = $region9
    $region8: #{tpu_custom_call.1} parent=1 // pred_region
      _
    $region9: #{tpu_custom_call.1} parent=1 // pred_fallthru
      _
    // Predicated region
    $region10: #{tpu_custom_call.1} parent=1 // pred_check
      _
    $region11: #{tpu_custom_call.1} parent=1 // pred_check_branch
      %27 = sbr.rel (0) target = $region13
    $region12: #{tpu_custom_call.1} parent=1 // pred_region
      _
    $region13: #{tpu_custom_call.1} parent=1 // pred_fallthru
      _
    // Predicated region
    $region14: #{tpu_custom_call.1} parent=1 // pred_check
      _
    $region15: #{tpu_custom_call.1} parent=1 // pred_check_branch
      %29 = sbr.rel (0) target = $region17
    $region16: #{tpu_custom_call.1} parent=1 // pred_region
      _
    $region17: #{tpu_custom_call.1} parent=1 // pred_fallthru
      _
    // Predicated region
    $region18: #{tpu_custom_call.1} parent=1 // pred_check
      _
    $region19: #{tpu_custom_call.1} parent=1 // pred_check_branch
      %31 = sbr.rel (0) target = $region21
    $region20: #{tpu_custom_call.1} parent=1 // pred_region
      _
    $region21: #{tpu_custom_call.1} parent=1 // pred_fallthru
      _
    // Predicated region
    $region22: #{tpu_custom_call.1} parent=1 // pred_check
      _
    $region23: #{tpu_custom_call.1} parent=1 // pred_check_branch
      %33 = sbr.rel (0) target = $region25
    $region24: #{tpu_custom_call.1} parent=1 // pred_region
      %s35 = ssub.s32 128, 128
      %36 = vsyncadd [#allocation6], %s35
      %s38 = sshll.u32 [#allocation5], 4
      %s39 = int_to_ptr.vmem [resolvable:$true] %s38
      %41 = dma.hbm_to_vmem [thread:$0]  %s5, 128, %s39, [#allocation6]
    $region25: #{tpu_custom_call.1} parent=1 // pred_fallthru
      _
    // Predicated region
    $region26: #{tpu_custom_call.1} parent=1 // pred_check
      _
    $region27: #{tpu_custom_call.1} parent=1 // pred_check_branch
      %43 = sbr.rel (0) target = $region29
    $region28: #{tpu_custom_call.1} parent=1 // pred_region
      %44 = dma.done [#allocation3], 32
    $region29: #{tpu_custom_call.1} parent=1 // pred_fallthru
      _
    // Predicated region
    $region30: #{tpu_custom_call.1} parent=1 // pred_check
      _
    $region31: #{tpu_custom_call.1} parent=1 // pred_check_branch
      %46 = sbr.rel (0) target = $region33
    $region32: #{tpu_custom_call.1} parent=1 // pred_region
      %47 = dma.done [#allocation6], 128
    $region33: #{tpu_custom_call.1} parent=1 // pred_fallthru
      _
    %v48 = vld [vmem:[#allocation2] sm:$0x3]
    %v49 = vld [vmem:[%s1] sm:$0x3]
    %vm50 = vcmask 123904
    %v51 = vsel %vm50, %v48, -inf
    %52 = vmax.xlane.f32.xlu0 %v51
    %v53 = vpop.xlane.xlu0 %52
    %v54 = vsub.f32 %v48, %v53
    %v55 = vmul.f32 %v54, 1.442695
    %v56 = vpow.pop %v55
    %v57 = vsel %vm50, %v56, 0.0
    %58 = vadd.xlane.f32.xlu0 %v57
    %v59 = vpop.xlane.xlu0 %58
    %v60 = vlog2.pop %v59
    %v61 = vmul.f32 %v60, 0.6931472
    %v62 = vlaneseq
    %v63 = vand.u32 %v62, 127
    %64 = vset.pattern.permute.xlu0 0
    %65 = vperm.xlu0 %64, %v49
    %v66 = vpop.permute.xlu0 %65
    %vm67 = vcmp.eq.s32.totalorder %v63, %v66
    %v68 = vsel %vm67, %v54, 0.0
    %v69 = vsel %vm50, %v68, 0.0
    %70 = vadd.xlane.f32.xlu0 %v69
    %v71 = vpop.xlane.xlu0 %70
    %v72 = vsel %vm50, %v54, 0.0
    %73 = vadd.xlane.f32.xlu0 %v72
    %v74 = vpop.xlane.xlu0 %73
    %v75 = vsub.f32 %v71, %v61
    %v76 = vmul.f32 %v75, 0.9
    %v77 = vmul.f32 %v61, 16.0
    %v78 = vsub.f32 %v74, %v77
    %v79 = vmul.f32 %v78, 0.00625
    %v80 = vadd.f32 %v76, %v79
    %v81 = vsub.f32 0.0, %v80
    %vm82 = vcmask 1024
    %v83 = vsel %vm82, %v81, 0.0
    %84 = vadd.xlane.f32.xlu0 %v83
    %v85 = vpop.xlane.xlu0 %84
    %v86 = vrot.slane %v85, 4
    %v87 = vadd.f32 %v85, %v86
    %v88 = vrot.slane %v87, 2
    %v89 = vadd.f32 %v87, %v88
    %v90 = vrot.slane %v89, 1
    %v91 = vadd.f32 %v89, %v90
    %s92 = vtos %v91
    %s93 = smul.f32 %s92, 0.5
    %v94 = vld [vmem:[%s2] sm:$0xff]
    %v95 = vld [vmem:[%s3] sm:$0xff]
    %vm96 = vcmask 130048
    %v97 = vsel %vm96, %v94, -inf
    %98 = vmax.xlane.f32.xlu0 %v97
    %v99 = vpop.xlane.xlu0 %98
    %v100 = vsub.f32 %v94, %v99
    %v101 = vmul.f32 %v100, 1.442695
    %v102 = vpow.pop %v101
    %v103 = vsel %vm96, %v102, 0.0
    %104 = vadd.xlane.f32.xlu0 %v103
    %v105 = vpop.xlane.xlu0 %104
    %v106 = vlog2.pop %v105
    %v107 = vmul.f32 %v106, 0.6931472
    %108 = vset.pattern.permute.xlu0 0
    %109 = vperm.xlu0 %108, %v95
    %v110 = vpop.permute.xlu0 %109
    %vm111 = vcmp.eq.s32.totalorder %v63, %v110
    %v112 = vsel %vm111, %v100, 0.0
    %v113 = vsel %vm96, %v112, 0.0
    %114 = vadd.xlane.f32.xlu0 %v113
    %v115 = vpop.xlane.xlu0 %114
    %v116 = vsel %vm96, %v100, 0.0
    %117 = vadd.xlane.f32.xlu0 %v116
    %v118 = vpop.xlane.xlu0 %117
    %v119 = vsub.f32 %v115, %v107
    %v120 = vmul.f32 %v119, 0.9
    %v121 = vmul.f32 %v107, 16.0
    %v122 = vsub.f32 %v118, %v121
    %v123 = vmul.f32 %v122, 0.00625
    %v124 = vadd.f32 %v120, %v123
    %v125 = vsub.f32 0.0, %v124
    %vm126 = vcmask 7168
    %v127 = vsel %vm126, %v125, 0.0
    %128 = vadd.xlane.f32.xlu0 %v127
    %v129 = vpop.xlane.xlu0 %128
    %v130 = vrot.slane %v129, 4
    %v131 = vadd.f32 %v129, %v130
    %v132 = vrot.slane %v131, 2
    %v133 = vadd.f32 %v131, %v132
    %v134 = vrot.slane %v133, 1
    %v135 = vadd.f32 %v133, %v134
    %s136 = vtos %v135
    %s137 = smul.f32 %s136, 0.125
    %v138 = vld [vmem:[%s4] sm:$0xff]
    %v139 = vld [vmem:[#allocation5] sm:$0xff]
    %v140 = vmul.f32 %v138, %v138
    %v141 = vmul.f32 %v139, %v139
    %vm142 = vcmask 261120
    %v143 = vsel %vm142, %v140, 0.0
    %144 = vadd.xlane.f32.xlu0 %v143
    %v145 = vpop.xlane.xlu0 %144
    %v146 = vsel %vm142, %v141, 0.0
    %147 = vadd.xlane.f32.xlu0 %v146
    %v148 = vpop.xlane.xlu0 %147
    %v150 = vsel %vm142, 1.0, 0
    %v153 = vsel %vm142, %v140, 0
    %v156 = vsel %vm142, %v141, 0
    %158 = vmatprep.subr.mxu0 0.0
    %159 = vmatpush1.xpose.msra.mxu0 0.0
    %160 = vmatprep.subr.mxu0 0.0
    %161 = vmatpush1.xpose.msra.mxu0 0.0
    %162 = vmatprep.subr.mxu0 0.0
    %163 = vmatpush1.xpose.msra.mxu0 0.0
    %164 = vmatprep.subr.mxu0 0.0
    %165 = vmatpush1.xpose.msra.mxu0 0.0
    %166 = vmatprep.subr.mxu0 0.0
    %167 = vmatpush1.xpose.msra.mxu0 0.0
    %168 = vmatprep.subr.mxu0 0.0
    %169 = vmatpush1.xpose.msra.mxu0 0.0
    %170 = vmatprep.subr.mxu0 0.0
    %171 = vmatpush1.xpose.msra.mxu0 0.0
    %172 = vmatprep.subr.mxu0 0.0
    %173 = vmatpush1.xpose.msra.mxu0 0.0
    %174 = vmatprep.subr.mxu0 0.0
    %175 = vmatpush1.xpose.msra.mxu0 0.0
    %176 = vmatprep.subr.mxu0 0.0
    %177 = vmatpush1.xpose.msra.mxu0 0.0
    %178 = vmatprep.subr.mxu0 0.0
    %179 = vmatpush1.xpose.msra.mxu0 0.0
    %180 = vmatprep.subr.mxu0 0.0
    %181 = vmatpush1.xpose.msra.mxu0 0.0
    %182 = vmatprep.subr.mxu0 0.0
    %183 = vmatpush1.xpose.msra.mxu0 0.0
    %184 = vmatprep.subr.mxu0 0.0
    %185 = vmatpush1.xpose.msra.mxu0 0.0
    %186 = vmatprep.subr.mxu0 0.0
    %187 = vmatpush1.xpose.msra.mxu0 %v156
    %188 = vmatprep.subr.mxu0 0.0
    %189 = vmatpush1.xpose.msra.mxu0 %v153
    %190 = vmatprep.subr.mxu0 0.0
    %191 = vmatpush2.xpose.msra.mxu0 0.0
    %192 = vmatprep.subr.mxu0 0.0
    %193 = vmatpush2.xpose.msra.mxu0 0.0
    %194 = vmatprep.subr.mxu0 0.0
    %195 = vmatpush2.xpose.msra.mxu0 0.0
    %196 = vmatprep.subr.mxu0 0.0
    %197 = vmatpush2.xpose.msra.mxu0 0.0
    %198 = vmatprep.subr.mxu0 0.0
    %199 = vmatpush2.xpose.msra.mxu0 0.0
    %200 = vmatprep.subr.mxu0 0.0
    %201 = vmatpush2.xpose.msra.mxu0 0.0
    %202 = vmatprep.subr.mxu0 0.0
    %203 = vmatpush2.xpose.msra.mxu0 0.0
    %204 = vmatprep.subr.mxu0 0.0
    %205 = vmatpush2.xpose.msra.mxu0 0.0
    %206 = vmatprep.subr.mxu0 0.0
    %207 = vmatpush2.xpose.msra.mxu0 0.0
    %208 = vmatprep.subr.mxu0 0.0
    %209 = vmatpush2.xpose.msra.mxu0 0.0
    %210 = vmatprep.subr.mxu0 0.0
    %211 = vmatpush2.xpose.msra.mxu0 0.0
    %212 = vmatprep.subr.mxu0 0.0
    %213 = vmatpush2.xpose.msra.mxu0 0.0
    %214 = vmatprep.subr.mxu0 0.0
    %215 = vmatpush2.xpose.msra.mxu0 0.0
    %216 = vmatprep.subr.mxu0 0.0
    %217 = vmatpush2.xpose.msra.mxu0 0.0
    %218 = vmatprep.subr.mxu0 0.0
    %219 = vmatpush2.xpose.msra.mxu0 0.0
    %220 = vmatprep.subr.mxu0 0.0
    %221 = vmatpush2.xpose.msra.mxu0 0.0
    %222 = vmatprep.mubr.f32.mxu0 0.0
    %223 = vmatmul.mubr.f32.gmra.mxu0 %v150
    %v224 = vpop.f32.mrf.mxu0
    %v225 = vadd.f32 0.0, %v224
    %v226 = vpop.f32.mrf.mxu0
    %227 = vdwg.mxu0
    %v229 = vsel %vm142, %v138, 0
    %v232 = vsel %vm142, %v139, 0
    %234 = vmatprep.subr.mxu0 0.0
    %235 = vmatpush1.xpose.msra.mxu0 0.0
    %236 = vmatprep.subr.mxu0 0.0
    %237 = vmatpush1.xpose.msra.mxu0 0.0
    %238 = vmatprep.subr.mxu0 0.0
    %239 = vmatpush1.xpose.msra.mxu0 0.0
    %240 = vmatprep.subr.mxu0 0.0
    %241 = vmatpush1.xpose.msra.mxu0 0.0
    %242 = vmatprep.subr.mxu0 0.0
    %243 = vmatpush1.xpose.msra.mxu0 0.0
    %244 = vmatprep.subr.mxu0 0.0
    %245 = vmatpush1.xpose.msra.mxu0 0.0
    %246 = vmatprep.subr.mxu0 0.0
    %247 = vmatpush1.xpose.msra.mxu0 0.0
    %248 = vmatprep.subr.mxu0 0.0
    %249 = vmatpush1.xpose.msra.mxu0 0.0
    %250 = vmatprep.subr.mxu0 0.0
    %251 = vmatpush1.xpose.msra.mxu0 0.0
    %252 = vmatprep.subr.mxu0 0.0
    %253 = vmatpush1.xpose.msra.mxu0 0.0
    %254 = vmatprep.subr.mxu0 0.0
    %255 = vmatpush1.xpose.msra.mxu0 0.0
    %256 = vmatprep.subr.mxu0 0.0
    %257 = vmatpush1.xpose.msra.mxu0 0.0
    %258 = vmatprep.subr.mxu0 0.0
    %259 = vmatpush1.xpose.msra.mxu0 0.0
    %260 = vmatprep.subr.mxu0 0.0
    %261 = vmatpush1.xpose.msra.mxu0 0.0
    %262 = vmatprep.subr.mxu0 0.0
    %263 = vmatpush1.xpose.msra.mxu0 %v232
    %264 = vmatprep.subr.mxu0 0.0
    %265 = vmatpush1.xpose.msra.mxu0 %v229
    %266 = vmatprep.subr.mxu0 0.0
    %267 = vmatpush2.xpose.msra.mxu0 0.0
    %268 = vmatprep.subr.mxu0 0.0
    %269 = vmatpush2.xpose.msra.mxu0 0.0
    %270 = vmatprep.subr.mxu0 0.0
    %271 = vmatpush2.xpose.msra.mxu0 0.0
    %272 = vmatprep.subr.mxu0 0.0
    %273 = vmatpush2.xpose.msra.mxu0 0.0
    %274 = vmatprep.subr.mxu0 0.0
    %275 = vmatpush2.xpose.msra.mxu0 0.0
    %276 = vmatprep.subr.mxu0 0.0
    %277 = vmatpush2.xpose.msra.mxu0 0.0
    %278 = vmatprep.subr.mxu0 0.0
    %279 = vmatpush2.xpose.msra.mxu0 0.0
    %280 = vmatprep.subr.mxu0 0.0
    %281 = vmatpush2.xpose.msra.mxu0 0.0
    %282 = vmatprep.subr.mxu0 0.0
    %283 = vmatpush2.xpose.msra.mxu0 0.0
    %284 = vmatprep.subr.mxu0 0.0
    %285 = vmatpush2.xpose.msra.mxu0 0.0
    %286 = vmatprep.subr.mxu0 0.0
    %287 = vmatpush2.xpose.msra.mxu0 0.0
    %288 = vmatprep.subr.mxu0 0.0
    %289 = vmatpush2.xpose.msra.mxu0 0.0
    %290 = vmatprep.subr.mxu0 0.0
    %291 = vmatpush2.xpose.msra.mxu0 0.0
    %292 = vmatprep.subr.mxu0 0.0
    %293 = vmatpush2.xpose.msra.mxu0 0.0
    %294 = vmatprep.subr.mxu0 0.0
    %295 = vmatpush2.xpose.msra.mxu0 0.0
    %296 = vmatprep.subr.mxu0 0.0
    %297 = vmatpush2.xpose.msra.mxu0 0.0
    %298 = vmatprep.mubr.f32.mxu0 0.0
    %299 = vmatmul.mubr.f32.gmra.mxu0 %v229
    %v300 = vpop.f32.mrf.mxu0
    %v301 = vadd.f32 0.0, %v300
    %v302 = vpop.f32.mrf.mxu0
    %303 = vmatprep.mubr.f32.mxu0 0.0
    %304 = vmatmul.mubr.f32.gmra.mxu0 %v232
    %v305 = vpop.f32.mrf.mxu0
    %v306 = vadd.f32 0.0, %v305
    %v307 = vpop.f32.mrf.mxu0
    %308 = vdwg.mxu0
    %v309 = vlaneseq
    %v310 = vshrl.u32 %v309, 7
    %v311 = vsub.s32 0, %v310
    %v312 = vrot.slane %v225, %v311
    %v313 = vadd.f32 %v145, %v312
    %v314 = vadd.f32 %v148, %v312
    %v315 = vmul.f32 %v301, 2.0
    %v316 = vmul.f32 %v306, 2.0
    %v317 = vsub.f32 %v313, %v315
    %v318 = vsub.f32 %v314, %v316
    %v319 = vmax.f32 %v317, 0.0
    %v320 = vmax.f32 %v318, 0.0
    %v321 = vsel %vm96, %v319, 0.0
    %v322 = vsel %vm96, %v320, 0.0
    %v323 = vadd.f32 %v321, %v322
    %324 = vadd.xlane.f32.xlu0 %v323
    %v325 = vpop.xlane.xlu0 %324
    %v326 = vrot.slane %v325, 4
    %v327 = vadd.f32 %v325, %v326
    %v328 = vrot.slane %v327, 2
    %v329 = vadd.f32 %v327, %v328
    %v330 = vrot.slane %v329, 1
    %v331 = vadd.f32 %v329, %v330
    %s332 = vtos %v331
    %s333 = smul.f32 %s332, 0.004166667
    %v334 = vrcp.pop 4.0
    %s335 = vtos %v334
    %s336 = smul.f32 %s333, %s335
    %s337 = smul.f32 %s336, 16.0
    %v338 = vstv %s337
    %v339 = vrcp.pop %v338
    %s340 = vtos %v339
    %s341 = smul.f32 -1.0, %s340
    %v342 = vstv %s341
    %v343 = vmul.f32 %v319, %v342
    %v344 = vmul.f32 %v320, %v342
    %v345 = vmul.f32 %v343, 1.442695
    %v346 = vpow.pop %v345
    %v347 = vmul.f32 %v344, 1.442695
    %v348 = vpow.pop %v347
    %v349 = vmul.f32 %v346, %v346
    %v350 = vmul.f32 %v348, %v348
    %v351 = vadd.f32 %v346, %v349
    %v352 = vadd.f32 %v348, %v350
    %v353 = vmul.f32 %v349, %v349
    %v354 = vmul.f32 %v350, %v350
    %v355 = vadd.f32 %v351, %v353
    %v356 = vadd.f32 %v352, %v354
    %v357 = vmul.f32 %v353, %v353
    %v358 = vmul.f32 %v354, %v354
    %v359 = vadd.f32 %v355, %v357
    %v360 = vadd.f32 %v356, %v358
    %v361 = vmul.f32 %v357, %v357
    %v362 = vmul.f32 %v358, %v358
    %v363 = vadd.f32 %v359, %v361
    %v364 = vadd.f32 %v360, %v362
    %v365 = vlaneseq
    %v366 = vshrl.u32 %v365, 7
    %v367 = vadd.s32 %v366, 8
    %vm368 = vcmp.lt.s32.totalorder %v366, 8
    %vm369 = vcmp.lt.s32.totalorder %v367, 8
    %v370 = vsel %vm368, 1.0, -1.0
    %v371 = vsel %vm369, 1.0, -1.0
    %v373 = vsel %vm96, %v363, 0
    %v376 = vsel %vm96, %v364, 0
    %378 = vmatprep.subr.mxu0 0.0
    %379 = vmatpush1.msra.mxu0 0.0
    %380 = vmatprep.subr.mxu0 0.0
    %381 = vmatpush1.msra.mxu0 0.0
    %382 = vmatprep.subr.mxu0 0.0
    %383 = vmatpush1.msra.mxu0 0.0
    %384 = vmatprep.subr.mxu0 0.0
    %385 = vmatpush1.msra.mxu0 0.0
    %386 = vmatprep.subr.mxu0 0.0
    %387 = vmatpush1.msra.mxu0 0.0
    %388 = vmatprep.subr.mxu0 0.0
    %389 = vmatpush1.msra.mxu0 0.0
    %390 = vmatprep.subr.mxu0 0.0
    %391 = vmatpush1.msra.mxu0 0.0
    %392 = vmatprep.subr.mxu0 0.0
    %393 = vmatpush1.msra.mxu0 0.0
    %394 = vmatprep.subr.mxu0 0.0
    %395 = vmatpush1.msra.mxu0 0.0
    %396 = vmatprep.subr.mxu0 0.0
    %397 = vmatpush1.msra.mxu0 0.0
    %398 = vmatprep.subr.mxu0 0.0
    %399 = vmatpush1.msra.mxu0 0.0
    %400 = vmatprep.subr.mxu0 0.0
    %401 = vmatpush1.msra.mxu0 0.0
    %402 = vmatprep.subr.mxu0 0.0
    %403 = vmatpush1.msra.mxu0 0.0
    %404 = vmatprep.subr.mxu0 0.0
    %405 = vmatpush1.msra.mxu0 0.0
    %406 = vmatprep.subr.mxu0 0.0
    %407 = vmatpush1.msra.mxu0 %v371
    %408 = vmatprep.subr.mxu0 0.0
    %409 = vmatpush1.msra.mxu0 %v370
    %410 = vmatprep.subr.mxu0 0.0
    %411 = vmatpush2.msra.mxu0 0.0
    %412 = vmatprep.subr.mxu0 0.0
    %413 = vmatpush2.msra.mxu0 0.0
    %414 = vmatprep.subr.mxu0 0.0
    %415 = vmatpush2.msra.mxu0 0.0
    %416 = vmatprep.subr.mxu0 0.0
    %417 = vmatpush2.msra.mxu0 0.0
    %418 = vmatprep.subr.mxu0 0.0
    %419 = vmatpush2.msra.mxu0 0.0
    %420 = vmatprep.subr.mxu0 0.0
    %421 = vmatpush2.msra.mxu0 0.0
    %422 = vmatprep.subr.mxu0 0.0
    %423 = vmatpush2.msra.mxu0 0.0
    %424 = vmatprep.subr.mxu0 0.0
    %425 = vmatpush2.msra.mxu0 0.0
    %426 = vmatprep.subr.mxu0 0.0
    %427 = vmatpush2.msra.mxu0 0.0
    %428 = vmatprep.subr.mxu0 0.0
    %429 = vmatpush2.msra.mxu0 0.0
    %430 = vmatprep.subr.mxu0 0.0
    %431 = vmatpush2.msra.mxu0 0.0
    %432 = vmatprep.subr.mxu0 0.0
    %433 = vmatpush2.msra.mxu0 0.0
    %434 = vmatprep.subr.mxu0 0.0
    %435 = vmatpush2.msra.mxu0 0.0
    %436 = vmatprep.subr.mxu0 0.0
    %437 = vmatpush2.msra.mxu0 0.0
    %438 = vmatprep.subr.mxu0 0.0
    %439 = vmatpush2.msra.mxu0 0.0
    %440 = vmatprep.subr.mxu0 0.0
    %441 = vmatpush2.msra.mxu0 0.0
    %442 = vmatprep.mubr.f32.mxu0 0.0
    %443 = vmatmul.mubr.f32.gmra.mxu0 %v373
    %v444 = vpop.f32.mrf.mxu0
    %v445 = vadd.f32 0.0, %v444
    %v446 = vpop.f32.mrf.mxu0
    %447 = vmatprep.mubr.f32.mxu0 0.0
    %448 = vmatmul.mubr.f32.gmra.mxu0 %v376
    %v449 = vpop.f32.mrf.mxu0
    %v450 = vadd.f32 0.0, %v449
    %v451 = vpop.f32.mrf.mxu0
    %452 = vdwg.mxu0
    %v453 = vmul.f32 %v370, %v445
    %v454 = vmul.f32 %v371, %v450
    %v455 = vsel %vm126, %v453, 0.0
    %v456 = vsel %vm126, %v454, 0.0
    %v457 = vadd.f32 %v455, %v456
    %458 = vadd.xlane.f32.xlu0 %v457
    %v459 = vpop.xlane.xlu0 %458
    %v460 = vrot.slane %v459, 4
    %v461 = vadd.f32 %v459, %v460
    %v462 = vrot.slane %v461, 2
    %v463 = vadd.f32 %v461, %v462
    %v464 = vrot.slane %v463, 1
    %v465 = vadd.f32 %v463, %v464
    %s466 = vtos %v465
    %s467 = smul.f32 %s466, 0.015625
    %s468 = sadd.f32 %s93, %s137
    %s469 = smul.f32 %s467, 0.1
    %s470 = sadd.f32 %s468, %s469
    %s471 = scalar_lea.smem [#allocation7], 0
    %472 = sst [smem:[%s471]] %s470
    // Predicated region
    $region34: #{tpu_custom_call.1} parent=1 // pred_check
      _
    $region35: #{tpu_custom_call.1} parent=1 // pred_check_branch
      %474 = sbr.rel (0) target = $region37
    $region36: #{tpu_custom_call.1} parent=1 // pred_region
      %s476 = ssub.s32 16, 16
      %477 = vsyncadd [#allocation4], %s476
      %480 = dma.smem_to_hbm [#allocation7], 16, %s6, [#allocation4]
    $region37: #{tpu_custom_call.1} parent=1 // pred_fallthru
      _
    // Predicated region
    $region38: #{tpu_custom_call.1} parent=1 // pred_check
      _
    $region39: #{tpu_custom_call.1} parent=1 // pred_check_branch
      %482 = sbr.rel (0) target = $region41
    $region40: #{tpu_custom_call.1} parent=1 // pred_region
      %483 = dma.done [#allocation4], 16
    $region41: #{tpu_custom_call.1} parent=1 // pred_fallthru
      _
    %484 = sfence
    %485 = vsyncpa [#allocation3], 1
    %486 = vsyncpa [#allocation6], 1
    %487 = vsyncpa [#allocation4], 1

</llo_original>
